<compile_context>
chip_gen: v7x
topology: tpu7x:2x2x1
jax: 0.10.0
libtpu: 0.0.40
codegen_flags: <defaults>
</compile_context>

<pallas_src>
import functools
import math

import jax
import jax.numpy as jnp
from jax.experimental import pallas as pl
from jax.experimental.pallas import tpu as pltpu


_VMEM_LIMIT = 32 * 1024 * 1024


# ----------------------------- small helpers -----------------------------

def _round_up(x, m):
    return ((x + m - 1) // m) * m


def _cpad(c):
    return _round_up(c, 128)


def _sigmoid(x):
    return 1.0 / (1.0 + jnp.exp(-x))


def _act(y, act):
    if act == "silu":
        return y * _sigmoid(y)
    return y


def _pick_tm(m):
    # 16-aligned blocks (safe for bf16 tiles); tiny row counts use a single full block.
    if m >= 16:
        return min(256, (m // 16) * 16)
    return m


def _pick_tn(n):
    return min(256, n)          # n is always a multiple of 128 (pre-padded channels)


def _pick_tk(k):
    # K tiles must divide K exactly (reduction axis: no partial blocks allowed).
    if k % 128 != 0:
        return k                # e.g. stem im2col K=27: single full-extent block
    tk = 128
    for mult in range(2, k // 128 + 1):
        cand = 128 * mult
        if cand > 1024:
            break
        if k % cand == 0:
            tk = cand
    return tk


def _pick_rows(hw):
    if hw >= 16:
        return min(512, (hw // 16) * 16)
    return hw


# ----------------------------- Pallas kernels -----------------------------

def _mm_kernel(*refs, act, has_gate, has_res):
    # Fused (1x1 conv / im2col conv) matmul: optional SE-gate prologue, bf16 MXU matmul,
    # f32 accumulation, folded-BN scale/bias + activation epilogue, optional residual add.
    a_ref, w_ref, scale_ref, bias_ref = refs[:4]
    idx = 4
    g_ref = None
    r_ref = None
    if has_gate:
        g_ref = refs[idx]
        idx += 1
    if has_res:
        r_ref = refs[idx]
        idx += 1
    o_ref = refs[idx]
    acc_ref = refs[idx + 1]

    kq = pl.program_id(3)

    @pl.when(kq == 0)
    def _():
        acc_ref[...] = jnp.zeros_like(acc_ref)

    a = a_ref[0]                                              # (TM, TK)
    if has_gate:
        a = a.astype(jnp.float32) * _sigmoid(g_ref[0].astype(jnp.float32))
    acc_ref[...] += jnp.dot(a.astype(jnp.bfloat16), w_ref[...],
                            preferred_element_type=jnp.float32)

    @pl.when(kq == pl.num_programs(3) - 1)
    def _():
        y = acc_ref[...] * scale_ref[...] + bias_ref[...]     # f32 epilogue
        y = _act(y, act)
        if has_res:
            y = y + r_ref[0].astype(jnp.float32)
        o_ref[0] = y.astype(o_ref.dtype)


def _dw_kernel(x_ref, w_ref, scale_ref, bias_ref, o_ref, *, k, stride, ho, wo):
    # Depthwise conv: x block is the (phase-decomposed) padded input (s*s, Hq, Wq, TC);
    # per-channel k*k tap accumulation with static in-kernel slices + folded BN + SiLU.
    tc = x_ref.shape[-1]
    wv = w_ref[...].astype(jnp.float32)                       # (taps_pad, TC)
    acc = jnp.zeros((ho, wo, tc), jnp.float32)
    for i in range(k):
        for j in range(k):
            p = (i % stride) * stride + (j % stride)
            i0, j0 = i // stride, j // stride
            tap = x_ref[p, i0:i0 + ho, j0:j0 + wo, :].astype(jnp.float32)
            acc = acc + tap * wv[i * k + j]
    y = acc * scale_ref[...] + bias_ref[...]
    y = y * _sigmoid(y)                                       # SiLU
    o_ref[0] = y.astype(o_ref.dtype)


def _se_kernel(x_ref, w1_ref, b1_ref, w2_ref, b2_ref, g_ref, acc_ref, *, hw, need_mask):
    # Fused Squeeze-Excite: global average pool (chunked reduction over HW) + FC1 + SiLU
    # + FC2 producing the per-(sample, channel) gate logits.
    t = pl.program_id(0)

    @pl.when(t == 0)
    def _():
        acc_ref[...] = jnp.zeros_like(acc_ref)

    x = x_ref[...].astype(jnp.float32)                        # (N, THW, C)
    if need_mask:
        row = t * x.shape[1] + jax.lax.broadcasted_iota(jnp.int32, x.shape, 1)
        x = jnp.where(row < hw, x, 0.0)
    acc_ref[...] += jnp.sum(x, axis=1)

    @pl.when(t == pl.num_programs(0) - 1)
    def _():
        pooled = acc_ref[...] * (1.0 / hw)
        r = jnp.dot(pooled.astype(jnp.bfloat16), w1_ref[...],
                    preferred_element_type=jnp.float32) + b1_ref[...]
        r = r * _sigmoid(r)                                   # SiLU
        g = jnp.dot(r.astype(jnp.bfloat16), w2_ref[...],
                    preferred_element_type=jnp.float32) + b2_ref[...]
        g_ref[...] = g.astype(g_ref.dtype)


def _head_kernel(x_ref, w_ref, b_ref, o_ref, acc_ref, *, hw, need_mask):
    # Fused global average pool + classifier matmul.
    t = pl.program_id(0)

    @pl.when(t == 0)
    def _():
        acc_ref[...] = jnp.zeros_like(acc_ref)

    x = x_ref[...].astype(jnp.float32)
    if need_mask:
        row = t * x.shape[1] + jax.lax.broadcasted_iota(jnp.int32, x.shape, 1)
        x = jnp.where(row < hw, x, 0.0)
    acc_ref[...] += jnp.sum(x, axis=1)

    @pl.when(t == pl.num_programs(0) - 1)
    def _():
        pooled = acc_ref[...] * (1.0 / hw)
        o_ref[...] = jnp.dot(pooled.astype(jnp.bfloat16), w_ref[...],
                             preferred_element_type=jnp.float32) + b_ref[...]


# ----------------------------- Pallas wrappers -----------------------------

@functools.partial(jax.jit, static_argnames=("act",))
def matmul_fused(a, w, scale, bias, *, gate=None, res=None, act="none"):
    # a: (B, M, K) activations; w: (K, N) bf16; scale/bias: (1, N) f32;
    # gate: (B, 1, K) or None; res: (B, M, N) or None.  Returns (B, M, N) bf16.
    bsz, m, k = a.shape
    n = w.shape[1]
    tm, tn, tk = _pick_tm(m), _pick_tn(n), _pick_tk(k)
    grid = (bsz, pl.cdiv(m, tm), pl.cdiv(n, tn), k // tk)

    in_specs = [
        pl.BlockSpec((1, tm, tk), lambda b, i, j, q: (b, i, q)),
        pl.BlockSpec((tk, tn), lambda b, i, j, q: (q, j)),
        pl.BlockSpec((1, tn), lambda b, i, j, q: (0, j)),
        pl.BlockSpec((1, tn), lambda b, i, j, q: (0, j)),
    ]
    args = [a.astype(jnp.bfloat16), w, scale, bias]
    if gate is not None:
        in_specs.append(pl.BlockSpec((1, 1, tk), lambda b, i, j, q: (b, 0, q)))
        args.append(gate)
    if res is not None:
        in_specs.append(pl.BlockSpec((1, tm, tn), lambda b, i, j, q: (b, i, j)))
        args.append(res)

    return pl.pallas_call(
        functools.partial(_mm_kernel, act=act,
                          has_gate=gate is not None, has_res=res is not None),
        grid=grid,
        in_specs=in_specs,
        out_specs=pl.BlockSpec((1, tm, tn), lambda b, i, j, q: (b, i, j)),
        out_shape=jax.ShapeDtypeStruct((bsz, m, n), jnp.bfloat16),
        scratch_shapes=[pltpu.VMEM((tm, tn), jnp.float32)],
        compiler_params=pltpu.CompilerParams(
            dimension_semantics=("parallel", "parallel", "parallel", "arbitrary"),
            vmem_limit_bytes=_VMEM_LIMIT),
    )(*args)


@functools.partial(jax.jit, static_argnames=("k", "stride"))
def dwconv_bn_act(x, p, *, k, stride):
    # x: (N, H, W, Cp) bf16 (channels pre-padded).  In-kernel tap accumulation: no im2col.
    n, h, w, c = x.shape
    pad = k // 2
    ho = (h + 2 * pad - k) // stride + 1
    wo = (w + 2 * pad - k) // stride + 1
    xp = jnp.pad(x, ((0, 0), (pad, pad), (pad, pad), (0, 0)))
    s = stride
    hp, wp = h + 2 * pad, w + 2 * pad
    hq, wq = -(-hp // s), -(-wp // s)
    if s == 1:
        ph = xp                                               # (N, Hp, Wp, C)
    else:
        # Split the padded map into s*s strided phases so the kernel needs only
        # unit-stride slices (one extra copy of the input instead of k*k im2col copies).
        phases = []
        for a in range(s):
            for b in range(s):
                sub = xp[:, a::s, b::s, :]
                sub = jnp.pad(sub, ((0, 0), (0, hq - sub.shape[1]),
                                    (0, wq - sub.shape[2]), (0, 0)))
                phases.append(sub)
        ph = jnp.stack(phases, axis=1).reshape(n * s * s, hq, wq, c)

    tc = min(128, c)
    taps_pad = p["w"].shape[0]
    return pl.pallas_call(
        functools.partial(_dw_kernel, k=k, stride=s, ho=ho, wo=wo),
        grid=(n, c // tc),
        in_specs=[
            pl.BlockSpec((s * s, hq, wq, tc), lambda b, ci: (b, 0, 0, ci)),
            pl.BlockSpec((taps_pad, tc), lambda b, ci: (0, ci)),
            pl.BlockSpec((1, tc), lambda b, ci: (0, ci)),
            pl.BlockSpec((1, tc), lambda b, ci: (0, ci)),
        ],
        out_specs=pl.BlockSpec((1, ho, wo, tc), lambda b, ci: (b, 0, 0, ci)),
        out_shape=jax.ShapeDtypeStruct((n, ho, wo, c), jnp.bfloat16),
        compiler_params=pltpu.CompilerParams(
            dimension_semantics=("parallel", "parallel"),
            vmem_limit_bytes=_VMEM_LIMIT),
    )(ph, p["w"], p["scale"], p["bias"])


@jax.jit
def se_pool_mlp(x3, p):
    # x3: (N, HW, Cp) bf16 -> SE gate logits (N, Cp) f32 (GAP + FC + SiLU + FC fused).
    n, hw, c = x3.shape
    rp = p["w1"].shape[1]
    thw = _pick_rows(hw)
    need_mask = (hw % thw) != 0
    return pl.pallas_call(
        functools.partial(_se_kernel, hw=hw, need_mask=need_mask),
        grid=(pl.cdiv(hw, thw),),
        in_specs=[
            pl.BlockSpec((n, thw, c), lambda t: (0, t, 0)),
            pl.BlockSpec((c, rp), lambda t: (0, 0)),
            pl.BlockSpec((1, rp), lambda t: (0, 0)),
            pl.BlockSpec((rp, c), lambda t: (0, 0)),
            pl.BlockSpec((1, c), lambda t: (0, 0)),
        ],
        out_specs=pl.BlockSpec((n, c), lambda t: (0, 0)),
        out_shape=jax.ShapeDtypeStruct((n, c), jnp.float32),
        scratch_shapes=[pltpu.VMEM((n, c), jnp.float32)],
        compiler_params=pltpu.CompilerParams(
            dimension_semantics=("arbitrary",),
            vmem_limit_bytes=_VMEM_LIMIT),
    )(x3, p["w1"], p["b1"], p["w2"], p["b2"])


@jax.jit
def head_pool_classifier(x3, wc, bc):
    # x3: (N, HW, 1536) bf16 -> logits (N, NCp) f32 (GAP + classifier fused).
    n, hw, c = x3.shape
    ncp = wc.shape[1]
    thw = _pick_rows(hw)
    need_mask = (hw % thw) != 0
    return pl.pallas_call(
        functools.partial(_head_kernel, hw=hw, need_mask=need_mask),
        grid=(pl.cdiv(hw, thw),),
        in_specs=[
            pl.BlockSpec((n, thw, c), lambda t: (0, t, 0)),
            pl.BlockSpec((c, ncp), lambda t: (0, 0)),
            pl.BlockSpec((1, ncp), lambda t: (0, 0)),
        ],
        out_specs=pl.BlockSpec((n, ncp), lambda t: (0, 0)),
        out_shape=jax.ShapeDtypeStruct((n, ncp), jnp.float32),
        scratch_shapes=[pltpu.VMEM((n, c), jnp.float32)],
        compiler_params=pltpu.CompilerParams(
            dimension_semantics=("arbitrary",),
            vmem_limit_bytes=_VMEM_LIMIT),
    )(x3, wc, bc)


# ----------------------------- layer glue (reshapes / stem im2col only) -----------------------------

def _extract_patches(x, k, stride, pad):
    # x: (N,H,W,C) -> (N, Ho, Wo, k*k, C); PyTorch conv2d output-size semantics (stem only).
    n, h, w, c = x.shape
    ho = (h + 2 * pad - k) // stride + 1
    wo = (w + 2 * pad - k) // stride + 1
    xp = jnp.pad(x, ((0, 0), (pad, pad), (pad, pad), (0, 0)))
    taps = []
    for i in range(k):
        for j in range(k):
            taps.append(xp[:, i:i + (ho - 1) * stride + 1:stride,
                           j:j + (wo - 1) * stride + 1:stride, :])
    return jnp.stack(taps, axis=3), ho, wo


def conv1x1_bn_act(x, p, act):
    n, h, w, c = x.shape
    y = matmul_fused(x.reshape(1, n * h * w, c), p["w"], p["scale"], p["bias"], act=act)
    return y.reshape(n, h, w, p["w"].shape[1])


# ----------------------------- EfficientNet-B3 definition -----------------------------

_B3_WIDTH, _B3_DEPTH = 1.2, 1.4
# (block_type, repeats, kernel, stride, expand_ratio, out_chs, se_ratio) — EfficientNet base arch.
_BASE_ARCH = [
    ("ds", 1, 3, 1, 1, 16, 0.25),
    ("ir", 2, 3, 2, 6, 24, 0.25),
    ("ir", 2, 5, 2, 6, 40, 0.25),
    ("ir", 3, 3, 2, 6, 80, 0.25),
    ("ir", 3, 5, 1, 6, 112, 0.25),
    ("ir", 4, 5, 2, 6, 192, 0.25),
    ("ir", 1, 3, 1, 6, 320, 0.25),
]


def _round_channels(c, multiplier=_B3_WIDTH, divisor=8, round_limit=0.9):
    v = c * multiplier
    new_v = max(divisor, int(v + divisor / 2) // divisor * divisor)
    if new_v < round_limit * v:
        new_v += divisor
    return int(new_v)


class _KeyGen:
    def __init__(self, key):
        self._key = key

    def __call__(self):
        self._key, sub = jax.random.split(self._key)
        return sub


def _init_bn(kg, c, eps=1e-5):
    gamma = 1.0 + 0.1 * jax.random.normal(kg(), (c,), jnp.float32)
    beta = 0.1 * jax.random.normal(kg(), (c,), jnp.float32)
    mean = 0.1 * jax.random.normal(kg(), (c,), jnp.float32)
    var = jax.random.uniform(kg(), (c,), jnp.float32, 0.5, 1.5)
    scale = gamma / jnp.sqrt(var + eps)                     # eval-mode BN folded to scale/bias
    bias = beta - mean * scale
    return scale.reshape(1, c), bias.reshape(1, c)


def _init_conv_bn(kg, k, cin, cout, pad_in=True):
    # pad_in=True is only used for 1x1 convs (K == cin); the stem keeps its K=27 unpadded.
    fan_in = k * k * cin
    w = jax.random.normal(kg(), (fan_in, cout), jnp.float32) / math.sqrt(fan_in)
    scale, bias = _init_bn(kg, cout)
    kp = _cpad(fan_in) if pad_in else fan_in
    np_ = _cpad(cout)
    wp = jnp.zeros((kp, np_), jnp.float32).at[:fan_in, :cout].set(w).astype(jnp.bfloat16)
    sp = jnp.zeros((1, np_), jnp.float32).at[:, :cout].set(scale)
    bp = jnp.zeros((1, np_), jnp.float32).at[:, :cout].set(bias)
    return {"w": wp, "scale": sp, "bias": bp}


def _init_dw_bn(kg, k, c):
    w = jax.random.normal(kg(), (k * k, c), jnp.float32) / math.sqrt(k * k)
    scale, bias = _init_bn(kg, c)
    cp, tp = _cpad(c), _round_up(k * k, 8)
    wp = jnp.zeros((tp, cp), jnp.float32).at[:k * k, :c].set(w)
    sp = jnp.zeros((1, cp), jnp.float32).at[:, :c].set(scale)
    bp = jnp.zeros((1, cp), jnp.float32).at[:, :c].set(bias)
    return {"w": wp, "scale": sp, "bias": bp}


def _init_se(kg, c, rd):
    w1 = jax.random.normal(kg(), (c, rd), jnp.float32) / math.sqrt(c)
    w2 = jax.random.normal(kg(), (rd, c), jnp.float32) / math.sqrt(rd)
    cp, rp = _cpad(c), _cpad(rd)
    return {
        "w1": jnp.zeros((cp, rp), jnp.float32).at[:c, :rd].set(w1).astype(jnp.bfloat16),
        "b1": jnp.zeros((1, rp), jnp.float32),
        "w2": jnp.zeros((rp, cp), jnp.float32).at[:rd, :c].set(w2).astype(jnp.bfloat16),
        "b2": jnp.zeros((1, cp), jnp.float32),
    }


def build_efficientnet_b3(key, num_classes, in_chs=3):
    kg = _KeyGen(key)
    stem_c = _round_channels(32)
    params = {"stem": _init_conv_bn(kg, 3, in_chs, stem_c, pad_in=False)}
    blocks = []
    cin = stem_c
    for btype, reps, k, s, e, cout_base, se_ratio in _BASE_ARCH:
        reps = int(math.ceil(reps * _B3_DEPTH))
        cout = _round_channels(cout_base)
        for i in range(reps):
            stride = s if i == 0 else 1
            mid = cin * e if btype == "ir" else cin
            blk = {"type": btype, "k": k, "stride": stride,
                   "has_skip": stride == 1 and cin == cout}
            if btype == "ir":
                blk["pw_exp"] = _init_conv_bn(kg, 1, cin, mid)
            blk["dw"] = _init_dw_bn(kg, k, mid)
            # SE reduction relative to block *input* channels (timm se_from_exp=False).
            blk["se"] = _init_se(kg, mid, max(1, int(cin * se_ratio)))
            blk["pw_proj"] = _init_conv_bn(kg, 1, mid, cout)
            blocks.append(blk)
            cin = cout
    params["blocks"] = blocks
    head_c = _round_channels(1280)
    params["head"] = _init_conv_bn(kg, 1, cin, head_c)
    ncp = _cpad(num_classes)
    wc = jax.random.normal(kg(), (head_c, num_classes), jnp.float32) / math.sqrt(head_c)
    bc = 0.01 * jax.random.normal(kg(), (1, num_classes), jnp.float32)
    params["classifier"] = {
        "w": jnp.zeros((head_c, ncp), jnp.float32).at[:, :num_classes].set(wc).astype(jnp.bfloat16),
        "b": jnp.zeros((1, ncp), jnp.float32).at[:, :num_classes].set(bc),
    }
    params["num_classes"] = num_classes
    return params


def _apply_block(x, blk):
    shortcut = x if blk["has_skip"] else None
    if blk["type"] == "ir":
        x = conv1x1_bn_act(x, blk["pw_exp"], "silu")           # pointwise expand + BN + SiLU
    x = dwconv_bn_act(x, blk["dw"], k=blk["k"], stride=blk["stride"])   # depthwise + BN + SiLU
    n, h, w, c = x.shape
    x3 = x.reshape(n, h * w, c)
    g = se_pool_mlp(x3, blk["se"])                             # fused SE pool + MLP -> gate logits
    res = shortcut.reshape(n, h * w, shortcut.shape[-1]) if blk["has_skip"] else None
    # pointwise project + BN (linear), with SE gating fused in the prologue and the
    # residual add fused in the epilogue.
    y = matmul_fused(x3, blk["pw_proj"]["w"], blk["pw_proj"]["scale"], blk["pw_proj"]["bias"],
                     gate=g.reshape(n, 1, c), res=res, act="none")
    return y.reshape(n, h, w, blk["pw_proj"]["w"].shape[1])


def efficientnet_b3_forward(params, x_nchw):
    # layout: NCHW in (PyTorch), NHWC internally; channel dims padded to 128 throughout.
    x = jnp.transpose(x_nchw.astype(jnp.float32), (0, 2, 3, 1))
    n = x.shape[0]
    # stem: 3x3 stride-2 conv via im2col (K = 27, kept unpadded) + fused matmul/BN/SiLU.
    patches, ho, wo = _extract_patches(x, 3, 2, 1)
    a = patches.reshape(1, n * ho * wo, -1)
    y = matmul_fused(a, params["stem"]["w"], params["stem"]["scale"],
                     params["stem"]["bias"], act="silu")
    x = y.reshape(n, ho, wo, params["stem"]["w"].shape[1])
    for blk in params["blocks"]:
        x = _apply_block(x, blk)
    x = conv1x1_bn_act(x, params["head"], "silu")
    n, h, w, c = x.shape
    # TODO(synk): timm applies Dropout(p=0.3) before the classifier; identity in eval mode.
    logits = head_pool_classifier(x.reshape(n, h * w, c),
                                  params["classifier"]["w"], params["classifier"]["b"])
    return logits[:, :params["num_classes"]]


# ----------------------------- main -----------------------------

if __name__ == "__main__":
    num_classes = 10
    key = jax.random.PRNGKey(0)
    pkey, xkey = jax.random.split(key)
    params = build_efficientnet_b3(pkey, num_classes)
    x = jax.random.normal(xkey, (2, 3, 16, 16), jnp.float32)   # NCHW like the PyTorch module
    logits = efficientnet_b3_forward(params, x)
    logits = jax.block_until_ready(logits)
    assert logits.shape == (2, num_classes)
    assert bool(jnp.all(jnp.isfinite(logits)))
    print("KERNEL_OK")
</pallas_src>

<mosaic_0001>
module attributes {stable_mosaic.version = 11 : i64} {
  func.func @_mm_kernel(%arg0: i32, %arg1: i32, %arg2: i32, %arg3: i32, %arg4: memref<1x128x27xbf16, #tpu.memory_space<vmem>>, %arg5: memref<27x128xbf16, #tpu.memory_space<vmem>>, %arg6: memref<1x128xf32, #tpu.memory_space<vmem>>, %arg7: memref<1x128xf32, #tpu.memory_space<vmem>>, %arg8: memref<1x128x128xbf16, #tpu.memory_space<vmem>>, %arg9: memref<128x128xf32, #tpu.memory_space<vmem>>) attributes {dimension_semantics = [#tpu.dimension_semantics<parallel>, #tpu.dimension_semantics<parallel>, #tpu.dimension_semantics<parallel>, #tpu.dimension_semantics<arbitrary>], iteration_bounds = array<i64: 1, 1, 1, 1>, scalar_prefetch = 0 : i64, scratch_operands = 1 : i64, tpu.core_type = #tpu.core_type<tc>, window_params = [{transform_indices = @transform_0, window_bounds = array<i64: 1, 128, 27>}, {transform_indices = @transform_1, window_bounds = array<i64: 27, 128>}, {transform_indices = @transform_2, window_bounds = array<i64: 1, 128>}, {transform_indices = @transform_3, window_bounds = array<i64: 1, 128>}, {transform_indices = @transform_4, window_bounds = array<i64: 1, 128, 128>}]} {
    %c0_i32 = arith.constant 0 : i32
    %0 = arith.cmpi eq, %arg3, %c0_i32 : i32
    %1 = arith.extui %0 : i1 to i32
    %c0_i32_0 = arith.constant 0 : i32
    %2 = arith.cmpi ne, %1, %c0_i32_0 : i32
    scf.if %2 {
      %cst_11 = arith.constant 0.000000e+00 : f32
      %13 = vector.broadcast %cst_11 : f32 to vector<128x128xf32>
      %c0_12 = arith.constant 0 : index
      %c0_13 = arith.constant 0 : index
      %14 = vector.load %arg9[%c0_12, %c0_13] : memref<128x128xf32, #tpu.memory_space<vmem>>, vector<128x128xf32>
      tpu.vector_store %arg9[%c0_12, %c0_13], %13 {strides = array<i32>} : memref<128x128xf32, #tpu.memory_space<vmem>>, vector<128x128xf32>,
    } else {
    }
    %c0 = arith.constant 0 : index
    %c0_1 = arith.constant 0 : index
    %c0_2 = arith.constant 0 : index
    %3 = vector.load %arg4[%c0, %c0_1, %c0_2] : memref<1x128x27xbf16, #tpu.memory_space<vmem>>, vector<1x128x27xbf16>
    %4 = vector.shape_cast %3 : vector<1x128x27xbf16> to vector<128x27xbf16>
    %c0_3 = arith.constant 0 : index
    %c0_4 = arith.constant 0 : index
    %5 = vector.load %arg9[%c0_3, %c0_4] : memref<128x128xf32, #tpu.memory_space<vmem>>, vector<128x128xf32>
    %c0_5 = arith.constant 0 : index
    %c0_6 = arith.constant 0 : index
    %6 = vector.load %arg5[%c0_5, %c0_6] : memref<27x128xbf16, #tpu.memory_space<vmem>>, vector<27x128xbf16>
    %cst = arith.constant dense<0.000000e+00> : vector<128x128xf32>
    %7 = tpu.matmul %4, %6, %cst {dimension_numbers = #tpu.dot_dimension_numbers<[1], [0], [0], [1], [0, 0, 1, 1], [], []>} : vector<128x27xbf16>, vector<27x128xbf16>, vector<128x128xf32> -> vector<128x128xf32>
    %8 = arith.addf %5, %7 : vector<128x128xf32>
    %c0_7 = arith.constant 0 : index
    %c0_8 = arith.constant 0 : index
    %9 = vector.load %arg9[%c0_7, %c0_8] : memref<128x128xf32, #tpu.memory_space<vmem>>, vector<128x128xf32>
    tpu.vector_store %arg9[%c0_7, %c0_8], %8 {strides = array<i32>} : memref<128x128xf32, #tpu.memory_space<vmem>>, vector<128x128xf32>,
    %c0_i32_9 = arith.constant 0 : i32
    %10 = arith.cmpi eq, %arg3, %c0_i32_9 : i32
    %11 = arith.extui %10 : i1 to i32
    %c0_i32_10 = arith.constant 0 : i32
    %12 = arith.cmpi ne, %11, %c0_i32_10 : i32
    scf.if %12 {
      %c0_11 = arith.constant 0 : index
      %c0_12 = arith.constant 0 : index
      %13 = vector.load %arg9[%c0_11, %c0_12] : memref<128x128xf32, #tpu.memory_space<vmem>>, vector<128x128xf32>
      %c0_13 = arith.constant 0 : index
      %c0_14 = arith.constant 0 : index
      %14 = vector.load %arg6[%c0_13, %c0_14] : memref<1x128xf32, #tpu.memory_space<vmem>>, vector<1x128xf32>
      %15 = vector.broadcast %14 : vector<1x128xf32> to vector<128x128xf32>
      %16 = arith.mulf %13, %15 : vector<128x128xf32>
      %c0_15 = arith.constant 0 : index
      %c0_16 = arith.constant 0 : index
      %17 = vector.load %arg7[%c0_15, %c0_16] : memref<1x128xf32, #tpu.memory_space<vmem>>, vector<1x128xf32>
      %18 = vector.broadcast %17 : vector<1x128xf32> to vector<128x128xf32>
      %19 = arith.addf %16, %18 : vector<128x128xf32>
      %cst_17 = arith.constant 0.000000e+00 : f32
      %20 = vector.broadcast %cst_17 : f32 to vector<128x128xf32>
      %21 = arith.subf %20, %19 : vector<128x128xf32>
      %22 = math.exp %21 : vector<128x128xf32>
      %cst_18 = arith.constant 1.000000e+00 : f32
      %23 = vector.broadcast %cst_18 : f32 to vector<128x128xf32>
      %24 = arith.addf %23, %22 : vector<128x128xf32>
      %cst_19 = arith.constant 1.000000e+00 : f32
      %25 = vector.broadcast %cst_19 : f32 to vector<128x128xf32>
      %26 = arith.divf %25, %24 : vector<128x128xf32>
      %27 = arith.mulf %19, %26 : vector<128x128xf32>
      %28 = arith.truncf %27 : vector<128x128xf32> to vector<128x128xbf16>
      %c0_20 = arith.constant 0 : index
      %c0_21 = arith.constant 0 : index
      %c0_22 = arith.constant 0 : index
      %29 = vector.load %arg8[%c0_20, %c0_21, %c0_22] : memref<1x128x128xbf16, #tpu.memory_space<vmem>>, vector<1x128x128xbf16>
      %30 = vector.shape_cast %29 : vector<1x128x128xbf16> to vector<128x128xbf16>
      %31 = vector.shape_cast %28 : vector<128x128xbf16> to vector<1x128x128xbf16>
      tpu.vector_store %arg8[%c0_20, %c0_21, %c0_22], %31 {strides = array<i32>} : memref<1x128x128xbf16, #tpu.memory_space<vmem>>, vector<1x128x128xbf16>,
    } else {
    }
    return
  }
  func.func @transform_0(%arg0: i32, %arg1: i32, %arg2: i32, %arg3: i32) -> (i32, i32, i32) {
    %c0_i32 = arith.constant 0 : i32
    return %arg0, %arg1, %arg3 : i32, i32, i32
  }
  func.func @transform_1(%arg0: i32, %arg1: i32, %arg2: i32, %arg3: i32) -> (i32, i32) {
    %c0_i32 = arith.constant 0 : i32
    return %arg3, %arg2 : i32, i32
  }
  func.func @transform_2(%arg0: i32, %arg1: i32, %arg2: i32, %arg3: i32) -> (i32, i32) {
    %c0_i32 = arith.constant 0 : i32
    %c0_i32_0 = arith.constant 0 : i32
    return %c0_i32, %arg2 : i32, i32
  }
  func.func @transform_3(%arg0: i32, %arg1: i32, %arg2: i32, %arg3: i32) -> (i32, i32) {
    %c0_i32 = arith.constant 0 : i32
    %c0_i32_0 = arith.constant 0 : i32
    return %c0_i32, %arg2 : i32, i32
  }
  func.func @transform_4(%arg0: i32, %arg1: i32, %arg2: i32, %arg3: i32) -> (i32, i32, i32) {
    %c0_i32 = arith.constant 0 : i32
    return %arg0, %arg1, %arg2 : i32, i32, i32
  }
}

</mosaic_0001>

<llo_original>
// kernel: matmul_fused.1
$region0: #{matmul_fused.1}
  #allocation0 [shape = 'u32[]', space=smem, size = 0x4, offset = 0x4, fixed_abs, tag = 'smem constant byte address 0x4 - core index']
  #allocation1 [shape = 'u32[144,128]{1,0:T(1,128)}', space=vmem, size = 0x12000, scoped, tag = 'internal scratch']
  #allocation2 [shape = 'f32[128,128]{1,0:T(8,128)}', space=vmem, size = 0x10000, scoped, tag = 'scratch operand']
  %s0 = inlined_call_operand.vmem [shape: bf16[1,128,27], index: 0, kind: input, shape index: {}]
  %s1 = inlined_call_operand.vmem [shape: bf16[27,128], index: 1, kind: input, shape index: {}]
  %s2 = inlined_call_operand.vmem [shape: f32[1,128], index: 2, kind: input, shape index: {}]
  %s3 = inlined_call_operand.vmem [shape: f32[1,128], index: 3, kind: input, shape index: {}]
  %s4 = inlined_call_operand.hbm [shape: bf16[1,128,128], index: 4, kind: output, shape index: {}]
  %s5 = sld [smem:[#allocation0]]
  $region34: #{matmul_fused.1} parent=0
    _
  %s7 = ssub.s32 1, %s5
  %s8 = scalar_select 0, %s7, %s5
  $region1: #{matmul_fused.1} parent=0
    #allocation3 [shape = 'u8[32768]{0}', space=vmem, size = 0x8000, scoped, tag = 'output window, operand 0, single buffered']
    #allocation4 [shape = 's32[1]{0}', space=sflag, size = 0x4, scoped, tag = 'scoped memory for matmul_fused.1']
    %9 = vsyncpa [#allocation4], 0
    // Predicated region
    $region2: #{matmul_fused.1} parent=1 // pred_check
      _
    $region3: #{matmul_fused.1} parent=1 // pred_check_branch
      %11 = sbr.rel (0) target = $region5
    $region4: #{matmul_fused.1} parent=1 // pred_region
      _
    $region5: #{matmul_fused.1} parent=1 // pred_fallthru
      _
    // Predicated region
    $region6: #{matmul_fused.1} parent=1 // pred_check
      _
    $region7: #{matmul_fused.1} parent=1 // pred_check_branch
      %13 = sbr.rel (0) target = $region9
    $region8: #{matmul_fused.1} parent=1 // pred_region
      _
    $region9: #{matmul_fused.1} parent=1 // pred_fallthru
      _
    // Predicated region
    $region10: #{matmul_fused.1} parent=1 // pred_check
      _
    $region11: #{matmul_fused.1} parent=1 // pred_check_branch
      %15 = sbr.rel (0) target = $region13
    $region12: #{matmul_fused.1} parent=1 // pred_region
      _
    $region13: #{matmul_fused.1} parent=1 // pred_fallthru
      _
    // Predicated region
    $region14: #{matmul_fused.1} parent=1 // pred_check
      _
    $region15: #{matmul_fused.1} parent=1 // pred_check_branch
      %17 = sbr.rel (0) target = $region17
    $region16: #{matmul_fused.1} parent=1 // pred_region
      _
    $region17: #{matmul_fused.1} parent=1 // pred_fallthru
      _
    %p19 = scmp.eq.s32.totalorder 0, 0
    // Predicated region
    $region18: #{matmul_fused.1} parent=1 // pred_check
      %p20 = pneg %p19
    $region19: #{matmul_fused.1} parent=1 // pred_check_branch
      %22 = sbr.rel (%p20) target = $region21
    $region20: #{matmul_fused.1} parent=1 // pred_region
      %23 = vst [vmem:[#allocation2] sm:$0xff] 0.0
      %24 = vst [vmem:[#allocation2 + $0x8] sm:$0xff] 0.0
      %25 = vst [vmem:[#allocation2 + $0x10] sm:$0xff] 0.0
      %26 = vst [vmem:[#allocation2 + $0x18] sm:$0xff] 0.0
      %27 = vst [vmem:[#allocation2 + $0x20] sm:$0xff] 0.0
      %28 = vst [vmem:[#allocation2 + $0x28] sm:$0xff] 0.0
      %29 = vst [vmem:[#allocation2 + $0x30] sm:$0xff] 0.0
      %30 = vst [vmem:[#allocation2 + $0x38] sm:$0xff] 0.0
      %31 = vst [vmem:[#allocation2 + $0x40] sm:$0xff] 0.0
      %32 = vst [vmem:[#allocation2 + $0x48] sm:$0xff] 0.0
      %33 = vst [vmem:[#allocation2 + $0x50] sm:$0xff] 0.0
      %34 = vst [vmem:[#allocation2 + $0x58] sm:$0xff] 0.0
      %35 = vst [vmem:[#allocation2 + $0x60] sm:$0xff] 0.0
      %36 = vst [vmem:[#allocation2 + $0x68] sm:$0xff] 0.0
      %37 = vst [vmem:[#allocation2 + $0x70] sm:$0xff] 0.0
      %38 = vst [vmem:[#allocation2 + $0x78] sm:$0xff] 0.0
    $region21: #{matmul_fused.1} parent=1 // pred_fallthru
      _
    %v39 = vld [vmem:[%s0] sm:$0xf]
    %v40 = vld [vmem:[%s0 + $0x4] sm:$0xf]
    %v41 = vld [vmem:[%s0 + $0x8] sm:$0xf]
    %v42 = vld [vmem:[%s0 + $0xc] sm:$0xf]
    %v43 = vld [vmem:[%s0 + $0x10] sm:$0xf]
    %v44 = vld [vmem:[%s0 + $0x14] sm:$0xf]
    %v45 = vld [vmem:[%s0 + $0x18] sm:$0xf]
    %v46 = vld [vmem:[%s0 + $0x1c] sm:$0xf]
    %v47 = vld [vmem:[%s0 + $0x20] sm:$0xf]
    %v48 = vld [vmem:[%s0 + $0x24] sm:$0xf]
    %v49 = vld [vmem:[%s0 + $0x28] sm:$0xf]
    %v50 = vld [vmem:[%s0 + $0x2c] sm:$0xf]
    %v51 = vld [vmem:[%s0 + $0x30] sm:$0xf]
    %v52 = vld [vmem:[%s0 + $0x34] sm:$0xf]
    %v53 = vld [vmem:[%s0 + $0x38] sm:$0xf]
    %v54 = vld [vmem:[%s0 + $0x3c] sm:$0xf]
    %v55 = vld [vmem:[#allocation2] sm:$0xff]
    %v56 = vld [vmem:[#allocation2 + $0x8] sm:$0xff]
    %v57 = vld [vmem:[#allocation2 + $0x10] sm:$0xff]
    %v58 = vld [vmem:[#allocation2 + $0x18] sm:$0xff]
    %v59 = vld [vmem:[#allocation2 + $0x20] sm:$0xff]
    %v60 = vld [vmem:[#allocation2 + $0x28] sm:$0xff]
    %v61 = vld [vmem:[#allocation2 + $0x30] sm:$0xff]
    %v62 = vld [vmem:[#allocation2 + $0x38] sm:$0xff]
    %v63 = vld [vmem:[#allocation2 + $0x40] sm:$0xff]
    %v64 = vld [vmem:[#allocation2 + $0x48] sm:$0xff]
    %v65 = vld [vmem:[#allocation2 + $0x50] sm:$0xff]
    %v66 = vld [vmem:[#allocation2 + $0x58] sm:$0xff]
    %v67 = vld [vmem:[#allocation2 + $0x60] sm:$0xff]
    %v68 = vld [vmem:[#allocation2 + $0x68] sm:$0xff]
    %v69 = vld [vmem:[#allocation2 + $0x70] sm:$0xff]
    %v70 = vld [vmem:[#allocation2 + $0x78] sm:$0xff]
    %v71 = vld [vmem:[%s1] sm:$0xf]
    %v72 = vld [vmem:[%s1 + $0x4] sm:$0xf]
    %v73 = vld [vmem:[%s1 + $0x8] sm:$0xf]
    %v74 = vld [vmem:[%s1 + $0xc] sm:$0x3]
    %v91 = vunpack.c.l.b16 %v39
    %v92 = vunpack.c.l.b16 %v40
    %v93 = vunpack.c.l.b16 %v41
    %v94 = vunpack.c.l.b16 %v42
    %v95 = vunpack.c.l.b16 %v43
    %v96 = vunpack.c.l.b16 %v44
    %v97 = vunpack.c.l.b16 %v45
    %v98 = vunpack.c.l.b16 %v46
    %v99 = vunpack.c.l.b16 %v47
    %v100 = vunpack.c.l.b16 %v48
    %v101 = vunpack.c.l.b16 %v49
    %v102 = vunpack.c.l.b16 %v50
    %v103 = vunpack.c.l.b16 %v51
    %v104 = vunpack.c.l.b16 %v52
    %v105 = vunpack.c.l.b16 %v53
    %v106 = vunpack.c.l.b16 %v54
    %v107 = vpack.c.b16 %v92, %v91
    %v108 = vpack.c.b16 %v94, %v93
    %v109 = vpack.c.b16 %v96, %v95
    %v110 = vpack.c.b16 %v98, %v97
    %v111 = vpack.c.b16 %v100, %v99
    %v112 = vpack.c.b16 %v102, %v101
    %v113 = vpack.c.b16 %v104, %v103
    %v114 = vpack.c.b16 %v106, %v105
    %v119 = vunpack.c.l.b16 %v71
    %v120 = vunpack.c.l.b16 %v72
    %v121 = vunpack.c.l.b16 %v73
    %v122 = vunpack.c.l.b16 %v74
    %v123 = vpack.c.b16 %v120, %v119
    %v124 = vpack.c.b16 %v122, %v121
    %vm126 = vcmask 220160
    %v128 = vsel %vm126, %v107, 0
    %v131 = vsel %vm126, %v108, 0
    %v134 = vsel %vm126, %v109, 0
    %v137 = vsel %vm126, %v110, 0
    %v140 = vsel %vm126, %v111, 0
    %v143 = vsel %vm126, %v112, 0
    %v146 = vsel %vm126, %v113, 0
    %v149 = vsel %vm126, %v114, 0
    %vm151 = vcmask 1044480
    %vm152 = vcmask 1045504
    %v153 = vsel %vm151, 4294967295, 65535
    %v154 = vsel %vm152, %v153, 0
    %v156 = vand.u32 %v124, %v154
    %158 = vmatprep.subr.bf16.mxu0 0
    %159 = vmatpush1.bf16.msra.mxu0 %v123
    %160 = vmatprep.subr.bf16.mxu0 0
    %161 = vmatpush1.bf16.msra.mxu0 %v156
    %162 = vmatprep.subr.bf16.mxu0 0
    %163 = vmatpush1.bf16.msra.mxu0 0
    %164 = vmatprep.subr.bf16.mxu0 0
    %165 = vmatpush1.bf16.msra.mxu0 0
    %166 = vmatprep.subr.bf16.mxu0 0
    %167 = vmatpush1.bf16.msra.mxu0 0
    %168 = vmatprep.subr.bf16.mxu0 0
    %169 = vmatpush1.bf16.msra.mxu0 0
    %170 = vmatprep.subr.bf16.mxu0 0
    %171 = vmatpush1.bf16.msra.mxu0 0
    %172 = vmatprep.subr.bf16.mxu0 0
    %173 = vmatpush1.bf16.msra.mxu0 0
    %174 = vmatprep.subr.bf16.mxu0 0
    %175 = vmatpush1.bf16.msra.mxu0 0
    %176 = vmatprep.subr.bf16.mxu0 0
    %177 = vmatpush1.bf16.msra.mxu0 0
    %178 = vmatprep.subr.bf16.mxu0 0
    %179 = vmatpush1.bf16.msra.mxu0 0
    %180 = vmatprep.subr.bf16.mxu0 0
    %181 = vmatpush1.bf16.msra.mxu0 0
    %182 = vmatprep.subr.bf16.mxu0 0
    %183 = vmatpush1.bf16.msra.mxu0 0
    %184 = vmatprep.subr.bf16.mxu0 0
    %185 = vmatpush1.bf16.msra.mxu0 0
    %186 = vmatprep.subr.bf16.mxu0 0
    %187 = vmatpush1.bf16.msra.mxu0 0
    %188 = vmatprep.subr.bf16.mxu0 0
    %189 = vmatpush1.bf16.msra.mxu0 0
    %190 = vmatprep.mubr.bf16.mxu0 0
    %191 = vmatmul.mubr.bf16.gmra.mrb[0].mxu0 %v128
    %v192 = vpop.f32.mrb[0].mxu0
    %v193 = vadd.f32 0.0, %v192
    %v194 = vpop.f32.mrb[0].mxu0
    %v195 = vpop.f32.mrb[0].mxu0
    %v196 = vadd.f32 0.0, %v195
    %v197 = vpop.f32.mrb[0].mxu0
    %198 = vmatprep.mubr.bf16.mxu0 0
    %199 = vmatmul.mubr.bf16.gmra.mrb[0].mxu0 %v131
    %v200 = vpop.f32.mrb[0].mxu0
    %v201 = vadd.f32 0.0, %v200
    %v202 = vpop.f32.mrb[0].mxu0
    %v203 = vpop.f32.mrb[0].mxu0
    %v204 = vadd.f32 0.0, %v203
    %v205 = vpop.f32.mrb[0].mxu0
    %206 = vmatprep.mubr.bf16.mxu0 0
    %207 = vmatmul.mubr.bf16.gmra.mrb[0].mxu0 %v134
    %v208 = vpop.f32.mrb[0].mxu0
    %v209 = vadd.f32 0.0, %v208
    %v210 = vpop.f32.mrb[0].mxu0
    %v211 = vpop.f32.mrb[0].mxu0
    %v212 = vadd.f32 0.0, %v211
    %v213 = vpop.f32.mrb[0].mxu0
    %214 = vmatprep.mubr.bf16.mxu0 0
    %215 = vmatmul.mubr.bf16.gmra.mrb[0].mxu0 %v137
    %v216 = vpop.f32.mrb[0].mxu0
    %v217 = vadd.f32 0.0, %v216
    %v218 = vpop.f32.mrb[0].mxu0
    %v219 = vpop.f32.mrb[0].mxu0
    %v220 = vadd.f32 0.0, %v219
    %v221 = vpop.f32.mrb[0].mxu0
    %222 = vmatprep.mubr.bf16.mxu0 0
    %223 = vmatmul.mubr.bf16.gmra.mrb[0].mxu0 %v140
    %v224 = vpop.f32.mrb[0].mxu0
    %v225 = vadd.f32 0.0, %v224
    %v226 = vpop.f32.mrb[0].mxu0
    %v227 = vpop.f32.mrb[0].mxu0
    %v228 = vadd.f32 0.0, %v227
    %v229 = vpop.f32.mrb[0].mxu0
    %230 = vmatprep.mubr.bf16.mxu0 0
    %231 = vmatmul.mubr.bf16.gmra.mrb[0].mxu0 %v143
    %v232 = vpop.f32.mrb[0].mxu0
    %v233 = vadd.f32 0.0, %v232
    %v234 = vpop.f32.mrb[0].mxu0
    %v235 = vpop.f32.mrb[0].mxu0
    %v236 = vadd.f32 0.0, %v235
    %v237 = vpop.f32.mrb[0].mxu0
    %238 = vmatprep.mubr.bf16.mxu0 0
    %239 = vmatmul.mubr.bf16.gmra.mrb[0].mxu0 %v146
    %v240 = vpop.f32.mrb[0].mxu0
    %v241 = vadd.f32 0.0, %v240
    %v242 = vpop.f32.mrb[0].mxu0
    %v243 = vpop.f32.mrb[0].mxu0
    %v244 = vadd.f32 0.0, %v243
    %v245 = vpop.f32.mrb[0].mxu0
    %246 = vmatprep.mubr.bf16.mxu0 0
    %247 = vmatmul.mubr.bf16.gmra.mrb[0].mxu0 %v149
    %v248 = vpop.f32.mrb[0].mxu0
    %v249 = vadd.f32 0.0, %v248
    %v250 = vpop.f32.mrb[0].mxu0
    %v251 = vpop.f32.mrb[0].mxu0
    %v252 = vadd.f32 0.0, %v251
    %v253 = vpop.f32.mrb[0].mxu0
    %254 = vdwg.mxu0
    %v255 = vadd.f32 %v55, %v193
    %v256 = vadd.f32 %v56, %v196
    %v257 = vadd.f32 %v57, %v201
    %v258 = vadd.f32 %v58, %v204
    %v259 = vadd.f32 %v59, %v209
    %v260 = vadd.f32 %v60, %v212
    %v261 = vadd.f32 %v61, %v217
    %v262 = vadd.f32 %v62, %v220
    %v263 = vadd.f32 %v63, %v225
    %v264 = vadd.f32 %v64, %v228
    %v265 = vadd.f32 %v65, %v233
    %v266 = vadd.f32 %v66, %v236
    %v267 = vadd.f32 %v67, %v241
    %v268 = vadd.f32 %v68, %v244
    %v269 = vadd.f32 %v69, %v249
    %v270 = vadd.f32 %v70, %v252
    %271 = vst [vmem:[#allocation2] sm:$0xff] %v255
    %272 = vst [vmem:[#allocation2 + $0x8] sm:$0xff] %v256
    %273 = vst [vmem:[#allocation2 + $0x10] sm:$0xff] %v257
    %274 = vst [vmem:[#allocation2 + $0x18] sm:$0xff] %v258
    %275 = vst [vmem:[#allocation2 + $0x20] sm:$0xff] %v259
    %276 = vst [vmem:[#allocation2 + $0x28] sm:$0xff] %v260
    %277 = vst [vmem:[#allocation2 + $0x30] sm:$0xff] %v261
    %278 = vst [vmem:[#allocation2 + $0x38] sm:$0xff] %v262
    %279 = vst [vmem:[#allocation2 + $0x40] sm:$0xff] %v263
    %280 = vst [vmem:[#allocation2 + $0x48] sm:$0xff] %v264
    %281 = vst [vmem:[#allocation2 + $0x50] sm:$0xff] %v265
    %282 = vst [vmem:[#allocation2 + $0x58] sm:$0xff] %v266
    %283 = vst [vmem:[#allocation2 + $0x60] sm:$0xff] %v267
    %284 = vst [vmem:[#allocation2 + $0x68] sm:$0xff] %v268
    %285 = vst [vmem:[#allocation2 + $0x70] sm:$0xff] %v269
    %286 = vst [vmem:[#allocation2 + $0x78] sm:$0xff] %v270
    // Predicated region
    $region22: #{matmul_fused.1} parent=1 // pred_check
      %p287 = pneg %p19
    $region23: #{matmul_fused.1} parent=1 // pred_check_branch
      %289 = sbr.rel (%p287) target = $region25
    $region24: #{matmul_fused.1} parent=1 // pred_region
      %v290 = vld [vmem:[#allocation2] sm:$0xff]
      %v291 = vld [vmem:[#allocation2 + $0x8] sm:$0xff]
      %v292 = vld [vmem:[#allocation2 + $0x10] sm:$0xff]
      %v293 = vld [vmem:[#allocation2 + $0x18] sm:$0xff]
      %v294 = vld [vmem:[#allocation2 + $0x20] sm:$0xff]
      %v295 = vld [vmem:[#allocation2 + $0x28] sm:$0xff]
      %v296 = vld [vmem:[#allocation2 + $0x30] sm:$0xff]
      %v297 = vld [vmem:[#allocation2 + $0x38] sm:$0xff]
      %v298 = vld [vmem:[#allocation2 + $0x40] sm:$0xff]
      %v299 = vld [vmem:[#allocation2 + $0x48] sm:$0xff]
      %v300 = vld [vmem:[#allocation2 + $0x50] sm:$0xff]
      %v301 = vld [vmem:[#allocation2 + $0x58] sm:$0xff]
      %v302 = vld [vmem:[#allocation2 + $0x60] sm:$0xff]
      %v303 = vld [vmem:[#allocation2 + $0x68] sm:$0xff]
      %v304 = vld [vmem:[#allocation2 + $0x70] sm:$0xff]
      %v305 = vld [vmem:[#allocation2 + $0x78] sm:$0xff]
      %v306 = vld [vmem:[%s2] sm:$0x1]
      %v308 = vlaneseq
      %v309 = vshrl.u32 %v308, 7
      %v310 = vsub.s32 0, %v309
      %v311 = vrot.slane %v306, %v310
      %v313 = vmul.f32 %v290, %v311
      %v314 = vmul.f32 %v291, %v311
      %v315 = vmul.f32 %v292, %v311
      %v316 = vmul.f32 %v293, %v311
      %v317 = vmul.f32 %v294, %v311
      %v318 = vmul.f32 %v295, %v311
      %v319 = vmul.f32 %v296, %v311
      %v320 = vmul.f32 %v297, %v311
      %v321 = vmul.f32 %v298, %v311
      %v322 = vmul.f32 %v299, %v311
      %v323 = vmul.f32 %v300, %v311
      %v324 = vmul.f32 %v301, %v311
      %v325 = vmul.f32 %v302, %v311
      %v326 = vmul.f32 %v303, %v311
      %v327 = vmul.f32 %v304, %v311
      %v328 = vmul.f32 %v305, %v311
      %v329 = vld [vmem:[%s3] sm:$0x1]
      %v331 = vlaneseq
      %v332 = vshrl.u32 %v331, 7
      %v333 = vsub.s32 0, %v332
      %v334 = vrot.slane %v329, %v333
      %v336 = vadd.f32 %v313, %v334
      %v337 = vadd.f32 %v314, %v334
      %v338 = vadd.f32 %v315, %v334
      %v339 = vadd.f32 %v316, %v334
      %v340 = vadd.f32 %v317, %v334
      %v341 = vadd.f32 %v318, %v334
      %v342 = vadd.f32 %v319, %v334
      %v343 = vadd.f32 %v320, %v334
      %v344 = vadd.f32 %v321, %v334
      %v345 = vadd.f32 %v322, %v334
      %v346 = vadd.f32 %v323, %v334
      %v347 = vadd.f32 %v324, %v334
      %v348 = vadd.f32 %v325, %v334
      %v349 = vadd.f32 %v326, %v334
      %v350 = vadd.f32 %v327, %v334
      %v351 = vadd.f32 %v328, %v334
      %v352 = vsub.f32 0.0, %v336
      %v353 = vsub.f32 0.0, %v337
      %v354 = vsub.f32 0.0, %v338
      %v355 = vsub.f32 0.0, %v339
      %v356 = vsub.f32 0.0, %v340
      %v357 = vsub.f32 0.0, %v341
      %v358 = vsub.f32 0.0, %v342
      %v359 = vsub.f32 0.0, %v343
      %v360 = vsub.f32 0.0, %v344
      %v361 = vsub.f32 0.0, %v345
      %v362 = vsub.f32 0.0, %v346
      %v363 = vsub.f32 0.0, %v347
      %v364 = vsub.f32 0.0, %v348
      %v365 = vsub.f32 0.0, %v349
      %v366 = vsub.f32 0.0, %v350
      %v367 = vsub.f32 0.0, %v351
      %v368 = vmul.f32 %v352, 1.442695
      %v369 = vpow.pop %v368
      %v370 = vmul.f32 %v353, 1.442695
      %v371 = vpow.pop %v370
      %v372 = vmul.f32 %v354, 1.442695
      %v373 = vpow.pop %v372
      %v374 = vmul.f32 %v355, 1.442695
      %v375 = vpow.pop %v374
      %v376 = vmul.f32 %v356, 1.442695
      %v377 = vpow.pop %v376
      %v378 = vmul.f32 %v357, 1.442695
      %v379 = vpow.pop %v378
      %v380 = vmul.f32 %v358, 1.442695
      %v381 = vpow.pop %v380
      %v382 = vmul.f32 %v359, 1.442695
      %v383 = vpow.pop %v382
      %v384 = vmul.f32 %v360, 1.442695
      %v385 = vpow.pop %v384
      %v386 = vmul.f32 %v361, 1.442695
      %v387 = vpow.pop %v386
      %v388 = vmul.f32 %v362, 1.442695
      %v389 = vpow.pop %v388
      %v390 = vmul.f32 %v363, 1.442695
      %v391 = vpow.pop %v390
      %v392 = vmul.f32 %v364, 1.442695
      %v393 = vpow.pop %v392
      %v394 = vmul.f32 %v365, 1.442695
      %v395 = vpow.pop %v394
      %v396 = vmul.f32 %v366, 1.442695
      %v397 = vpow.pop %v396
      %v398 = vmul.f32 %v367, 1.442695
      %v399 = vpow.pop %v398
      %v400 = vadd.f32 %v369, 1.0
      %v401 = vadd.f32 %v371, 1.0
      %v402 = vadd.f32 %v373, 1.0
      %v403 = vadd.f32 %v375, 1.0
      %v404 = vadd.f32 %v377, 1.0
      %v405 = vadd.f32 %v379, 1.0
      %v406 = vadd.f32 %v381, 1.0
      %v407 = vadd.f32 %v383, 1.0
      %v408 = vadd.f32 %v385, 1.0
      %v409 = vadd.f32 %v387, 1.0
      %v410 = vadd.f32 %v389, 1.0
      %v411 = vadd.f32 %v391, 1.0
      %v412 = vadd.f32 %v393, 1.0
      %v413 = vadd.f32 %v395, 1.0
      %v414 = vadd.f32 %v397, 1.0
      %v415 = vadd.f32 %v399, 1.0
      %v416 = vrcp.pop %v400
      %v417 = vmul.f32 1.0, %v416
      %v418 = vrcp.pop %v401
      %v419 = vmul.f32 1.0, %v418
      %v420 = vrcp.pop %v402
      %v421 = vmul.f32 1.0, %v420
      %v422 = vrcp.pop %v403
      %v423 = vmul.f32 1.0, %v422
      %v424 = vrcp.pop %v404
      %v425 = vmul.f32 1.0, %v424
      %v426 = vrcp.pop %v405
      %v427 = vmul.f32 1.0, %v426
      %v428 = vrcp.pop %v406
      %v429 = vmul.f32 1.0, %v428
      %v430 = vrcp.pop %v407
      %v431 = vmul.f32 1.0, %v430
      %v432 = vrcp.pop %v408
      %v433 = vmul.f32 1.0, %v432
      %v434 = vrcp.pop %v409
      %v435 = vmul.f32 1.0, %v434
      %v436 = vrcp.pop %v410
      %v437 = vmul.f32 1.0, %v436
      %v438 = vrcp.pop %v411
      %v439 = vmul.f32 1.0, %v438
      %v440 = vrcp.pop %v412
      %v441 = vmul.f32 1.0, %v440
      %v442 = vrcp.pop %v413
      %v443 = vmul.f32 1.0, %v442
      %v444 = vrcp.pop %v414
      %v445 = vmul.f32 1.0, %v444
      %v446 = vrcp.pop %v415
      %v447 = vmul.f32 1.0, %v446
      %v448 = vmul.f32 %v336, %v417
      %v449 = vmul.f32 %v337, %v419
      %v450 = vmul.f32 %v338, %v421
      %v451 = vmul.f32 %v339, %v423
      %v452 = vmul.f32 %v340, %v425
      %v453 = vmul.f32 %v341, %v427
      %v454 = vmul.f32 %v342, %v429
      %v455 = vmul.f32 %v343, %v431
      %v456 = vmul.f32 %v344, %v433
      %v457 = vmul.f32 %v345, %v435
      %v458 = vmul.f32 %v346, %v437
      %v459 = vmul.f32 %v347, %v439
      %v460 = vmul.f32 %v348, %v441
      %v461 = vmul.f32 %v349, %v443
      %v462 = vmul.f32 %v350, %v445
      %v463 = vmul.f32 %v351, %v447
      %v464 = vpack.c.bf16 %v449, %v448
      %v465 = vpack.c.bf16 %v451, %v450
      %v466 = vpack.c.bf16 %v453, %v452
      %v467 = vpack.c.bf16 %v455, %v454
      %v468 = vpack.c.bf16 %v457, %v456
      %v469 = vpack.c.bf16 %v459, %v458
      %v470 = vpack.c.bf16 %v461, %v460
      %v471 = vpack.c.bf16 %v463, %v462
      %v480 = vunpack.c.l.b16 %v464
      %v481 = vunpack.c.h.b16 %v464
      %v482 = vunpack.c.l.b16 %v465
      %v483 = vunpack.c.h.b16 %v465
      %v484 = vunpack.c.l.b16 %v466
      %v485 = vunpack.c.h.b16 %v466
      %v486 = vunpack.c.l.b16 %v467
      %v487 = vunpack.c.h.b16 %v467
      %v488 = vunpack.c.l.b16 %v468
      %v489 = vunpack.c.h.b16 %v468
      %v490 = vunpack.c.l.b16 %v469
      %v491 = vunpack.c.h.b16 %v469
      %v492 = vunpack.c.l.b16 %v470
      %v493 = vunpack.c.h.b16 %v470
      %v494 = vunpack.c.l.b16 %v471
      %v495 = vunpack.c.h.b16 %v471
      %v496 = vpack.c.b16 %v480, %v480
      %v497 = vpack.c.b16 %v481, %v481
      %v498 = vpack.c.b16 %v482, %v482
      %v499 = vpack.c.b16 %v483, %v483
      %v500 = vpack.c.b16 %v484, %v484
      %v501 = vpack.c.b16 %v485, %v485
      %v502 = vpack.c.b16 %v486, %v486
      %v503 = vpack.c.b16 %v487, %v487
      %v504 = vpack.c.b16 %v488, %v488
      %v505 = vpack.c.b16 %v489, %v489
      %v506 = vpack.c.b16 %v490, %v490
      %v507 = vpack.c.b16 %v491, %v491
      %v508 = vpack.c.b16 %v492, %v492
      %v509 = vpack.c.b16 %v493, %v493
      %v510 = vpack.c.b16 %v494, %v494
      %v511 = vpack.c.b16 %v495, %v495
      %528 = vst [vmem:[#allocation3] sm:$0xf] %v496
      %529 = vst [vmem:[#allocation3 + $0x4] sm:$0xf] %v497
      %530 = vst [vmem:[#allocation3 + $0x8] sm:$0xf] %v498
      %531 = vst [vmem:[#allocation3 + $0xc] sm:$0xf] %v499
      %532 = vst [vmem:[#allocation3 + $0x10] sm:$0xf] %v500
      %533 = vst [vmem:[#allocation3 + $0x14] sm:$0xf] %v501
      %534 = vst [vmem:[#allocation3 + $0x18] sm:$0xf] %v502
      %535 = vst [vmem:[#allocation3 + $0x1c] sm:$0xf] %v503
      %536 = vst [vmem:[#allocation3 + $0x20] sm:$0xf] %v504
      %537 = vst [vmem:[#allocation3 + $0x24] sm:$0xf] %v505
      %538 = vst [vmem:[#allocation3 + $0x28] sm:$0xf] %v506
      %539 = vst [vmem:[#allocation3 + $0x2c] sm:$0xf] %v507
      %540 = vst [vmem:[#allocation3 + $0x30] sm:$0xf] %v508
      %541 = vst [vmem:[#allocation3 + $0x34] sm:$0xf] %v509
      %542 = vst [vmem:[#allocation3 + $0x38] sm:$0xf] %v510
      %543 = vst [vmem:[#allocation3 + $0x3c] sm:$0xf] %v511
    $region25: #{matmul_fused.1} parent=1 // pred_fallthru
      _
    // Predicated region
    $region26: #{matmul_fused.1} parent=1 // pred_check
      _
    $region27: #{matmul_fused.1} parent=1 // pred_check_branch
      %545 = sbr.rel (0) target = $region29
    $region28: #{matmul_fused.1} parent=1 // pred_region
      %s547 = ssub.s32 1024, 1024
      %548 = vsyncadd [#allocation4], %s547
      %s549 = sshll.u32 [#allocation3], 4
      %s550 = int_to_ptr.vmem [resolvable:$true] %s549
      %555 = dma.vmem_to_hbm [thread:$0]  %s550, 1024, %s4, [#allocation4], 64, 64, 4
    $region29: #{matmul_fused.1} parent=1 // pred_fallthru
      _
    // Predicated region
    $region30: #{matmul_fused.1} parent=1 // pred_check
      _
    $region31: #{matmul_fused.1} parent=1 // pred_check_branch
      %557 = sbr.rel (0) target = $region33
    $region32: #{matmul_fused.1} parent=1 // pred_region
      %558 = dma.done [#allocation4], 1024
    $region33: #{matmul_fused.1} parent=1 // pred_fallthru
      _
    %559 = vsyncpa [#allocation4], 1

</llo_original>
